<compile_context>
chip_gen: v5e
topology: v5e:2x2
jax: 0.10.0
libtpu: 0.0.40
codegen_flags: <defaults>
</compile_context>

<pallas_src>
import jax
import jax.numpy as jnp
from jax.experimental import pallas as pl
from jax.experimental.pallas import tpu as pltpu


def _round_up(n, m):
    return ((n + m - 1) // m) * m


def two_layer_fc_kernel(x_ref, w1_ref, b1_ref, w2_ref, b2_ref, o_ref):
    # In-kernel bf16 cast of the activation tile (saves an extra HBM pass vs.
    # casting in the wrapper); fc1 runs on the MXU with f32 accumulation.
    x_bf16 = x_ref[...].astype(jnp.bfloat16)
    h = jnp.dot(x_bf16, w1_ref[...], preferred_element_type=jnp.float32)
    # Bias + ReLU epilogue in f32 on the VPU (lane-dense: Hp multiple of 128).
    h = jnp.maximum(h + b1_ref[...], 0.0)
    # fc2: (TM, Hp) @ (Hp, Cp), bf16 operands, f32 accumulate.
    out = jnp.dot(h.astype(jnp.bfloat16), w2_ref[...],
                  preferred_element_type=jnp.float32)
    # Full (TM, Cp) unmasked lane-dense store.
    o_ref[...] = (out + b2_ref[...]).astype(o_ref.dtype)


@jax.jit
def two_layer_fc(x, w1, b1, w2, b2):
    """Forward pass of TwoLayerFC.

    x:  (N, ...) float32, flattened to (N, D) like torch.flatten(x, 1)
    w1: (D, H) float32, b1: (H,), w2: (H, C), b2: (C,)
    Returns (N, C) float32 scores.
    """
    N = x.shape[0]
    x_flat = x.reshape(N, -1)          # layout-only reshape, no HBM copy
    D = x_flat.shape[1]
    H = w1.shape[1]
    C = w2.shape[1]

    # Lane-dense padded widths (last dims multiples of 128).
    Hp = _round_up(H, 128)
    Cp = _round_up(C, 128)

    # Only round the batch to the 8-row sublane granule when needed (no
    # TM-sized zero padding and no dtype conversion of x in the wrapper).
    Np8 = _round_up(N, 8)
    if Np8 != N:
        x_in = jnp.zeros((Np8, D), x_flat.dtype).at[:N].set(x_flat)
    else:
        x_in = x_flat

    # Batch tile: as large as possible (<= 1024 rows) to amortize per-step
    # overhead, but keep >= 2 grid steps when there is enough work so the
    # "parallel" batch axis gives both v7x TensorCores something to do.
    if Np8 <= 8:
        TM = Np8
    else:
        TM = min(1024, _round_up((Np8 + 1) // 2, 8))
    num_m_tiles = pl.cdiv(Np8, TM)

    # Weights/biases are tiny (w1 is D x 128 bf16 ~ 256 KiB for D=1024), so
    # padding/casting them in the wrapper is cheap; they stay VMEM-resident
    # inside the kernel via constant (0, 0) index maps.
    w1_p = jnp.zeros((D, Hp), jnp.bfloat16).at[:, :H].set(w1.astype(jnp.bfloat16))
    w2_p = jnp.zeros((Hp, Cp), jnp.bfloat16).at[:H, :C].set(w2.astype(jnp.bfloat16))
    b1_p = jnp.zeros((1, Hp), jnp.float32).at[0, :H].set(b1)
    b2_p = jnp.zeros((1, Cp), jnp.float32).at[0, :C].set(b2)

    out_padded = pl.pallas_call(
        two_layer_fc_kernel,
        out_shape=jax.ShapeDtypeStruct((Np8, Cp), jnp.float32),
        grid_spec=pl.GridSpec(
            grid=(num_m_tiles,),
            in_specs=[
                pl.BlockSpec((TM, D), lambda i: (i, 0)),    # x tile (f32)
                pl.BlockSpec((D, Hp), lambda i: (0, 0)),    # w1, VMEM-resident
                pl.BlockSpec((1, Hp), lambda i: (0, 0)),    # b1
                pl.BlockSpec((Hp, Cp), lambda i: (0, 0)),   # w2, VMEM-resident
                pl.BlockSpec((1, Cp), lambda i: (0, 0)),    # b2
            ],
            out_specs=pl.BlockSpec((TM, Cp), lambda i: (i, 0)),
        ),
        compiler_params=pltpu.CompilerParams(
            # Batch axis is independent -> shard across TensorCores (v7x).
            dimension_semantics=("parallel",),
        ),
    )(x_in, w1_p, b1_p, w2_p, b2_p)

    # Strip sublane / class-lane padding in the wrapper.
    return out_padded[:N, :C]


def init_params(key, input_size, hidden_size, num_classes):
    """Matches the PyTorch module's init: kaiming_normal_ weights, zero biases.

    kaiming_normal_ (default fan_in, relu gain) => std = sqrt(2 / fan_in).
    PyTorch stores Linear weight as (out, in); we keep (in, out) for the kernel.
    """
    k1, k2 = jax.random.split(key)
    w1 = jax.random.normal(k1, (input_size, hidden_size), jnp.float32) * jnp.sqrt(
        2.0 / input_size
    )
    b1 = jnp.zeros((hidden_size,), jnp.float32)
    w2 = jax.random.normal(k2, (hidden_size, num_classes), jnp.float32) * jnp.sqrt(
        2.0 / hidden_size
    )
    b2 = jnp.zeros((num_classes,), jnp.float32)
    return w1, b1, w2, b2


if __name__ == "__main__":
    key = jax.random.PRNGKey(0)
    kx, kp = jax.random.split(key)

    # Small CIFAR-like input: batch=2, channels=4, spatial=16x16 (NCHW).
    N, C_in, Hsp, Wsp = 2, 4, 16, 16
    input_size = C_in * Hsp * Wsp  # 1024
    hidden_size = 32
    num_classes = 10

    x = jax.random.normal(kx, (N, C_in, Hsp, Wsp), jnp.float32)
    w1, b1, w2, b2 = init_params(kp, input_size, hidden_size, num_classes)

    scores = two_layer_fc(x, w1, b1, w2, b2)
    scores = jax.block_until_ready(scores)
    assert scores.shape == (N, num_classes)

    # Reference 1: same math with the same bf16-operand / f32-accumulate casts.
    x_flat = x.reshape(N, -1)
    h_ref = jnp.dot(x_flat.astype(jnp.bfloat16), w1.astype(jnp.bfloat16),
                    preferred_element_type=jnp.float32)
    h_ref = jnp.maximum(h_ref + b1, 0.0)
    ref_bf16 = jnp.dot(h_ref.astype(jnp.bfloat16), w2.astype(jnp.bfloat16),
                       preferred_element_type=jnp.float32) + b2
    assert jnp.allclose(scores, ref_bf16, atol=1e-3, rtol=1e-3)

    # Reference 2: pure f32 math (looser tolerance: bf16 operand rounding).
    ref_f32 = jnp.maximum(x_flat @ w1 + b1, 0.0) @ w2 + b2
    assert jnp.allclose(scores, ref_f32, atol=5e-2, rtol=5e-2)

    print("KERNEL_OK")
</pallas_src>

<mosaic_0001>
module attributes {stable_mosaic.version = 11 : i64} {
  func.func @two_layer_fc_kernel(%arg0: i32, %arg1: memref<8x1024xf32, #tpu.memory_space<vmem>>, %arg2: memref<1024x128xbf16, #tpu.memory_space<vmem>>, %arg3: memref<1x128xf32, #tpu.memory_space<vmem>>, %arg4: memref<128x128xbf16, #tpu.memory_space<vmem>>, %arg5: memref<1x128xf32, #tpu.memory_space<vmem>>, %arg6: memref<8x128xf32, #tpu.memory_space<vmem>>) attributes {dimension_semantics = [#tpu.dimension_semantics<parallel>], iteration_bounds = array<i64: 1>, scalar_prefetch = 0 : i64, scratch_operands = 0 : i64, tpu.core_type = #tpu.core_type<tc>, window_params = [{transform_indices = @transform_0, window_bounds = array<i64: 8, 1024>}, {pipeline_mode = #tpu.pipeline_mode<synchronous>, transform_indices = @transform_1, window_bounds = array<i64: 1024, 128>}, {pipeline_mode = #tpu.pipeline_mode<synchronous>, transform_indices = @transform_2, window_bounds = array<i64: 1, 128>}, {pipeline_mode = #tpu.pipeline_mode<synchronous>, transform_indices = @transform_3, window_bounds = array<i64: 128, 128>}, {pipeline_mode = #tpu.pipeline_mode<synchronous>, transform_indices = @transform_4, window_bounds = array<i64: 1, 128>}, {transform_indices = @transform_5, window_bounds = array<i64: 8, 128>}]} {
    %c0 = arith.constant 0 : index
    %c0_0 = arith.constant 0 : index
    %0 = vector.load %arg1[%c0, %c0_0] : memref<8x1024xf32, #tpu.memory_space<vmem>>, vector<8x1024xf32>
    %1 = arith.truncf %0 : vector<8x1024xf32> to vector<8x1024xbf16>
    %c0_1 = arith.constant 0 : index
    %c0_2 = arith.constant 0 : index
    %2 = vector.load %arg2[%c0_1, %c0_2] : memref<1024x128xbf16, #tpu.memory_space<vmem>>, vector<1024x128xbf16>
    %cst = arith.constant dense<0.000000e+00> : vector<8x128xf32>
    %3 = tpu.matmul %1, %2, %cst {dimension_numbers = #tpu.dot_dimension_numbers<[1], [0], [0], [1], [0, 0, 1, 1], [], []>} : vector<8x1024xbf16>, vector<1024x128xbf16>, vector<8x128xf32> -> vector<8x128xf32>
    %c0_3 = arith.constant 0 : index
    %c0_4 = arith.constant 0 : index
    %4 = vector.load %arg3[%c0_3, %c0_4] : memref<1x128xf32, #tpu.memory_space<vmem>>, vector<1x128xf32>
    %5 = vector.broadcast %4 : vector<1x128xf32> to vector<8x128xf32>
    %6 = arith.addf %3, %5 : vector<8x128xf32>
    %cst_5 = arith.constant 0.000000e+00 : f32
    %7 = vector.broadcast %cst_5 : f32 to vector<8x128xf32>
    %8 = arith.maximumf %6, %7 : vector<8x128xf32>
    %9 = arith.truncf %8 : vector<8x128xf32> to vector<8x128xbf16>
    %c0_6 = arith.constant 0 : index
    %c0_7 = arith.constant 0 : index
    %10 = vector.load %arg4[%c0_6, %c0_7] : memref<128x128xbf16, #tpu.memory_space<vmem>>, vector<128x128xbf16>
    %cst_8 = arith.constant dense<0.000000e+00> : vector<8x128xf32>
    %11 = tpu.matmul %9, %10, %cst_8 {dimension_numbers = #tpu.dot_dimension_numbers<[1], [0], [0], [1], [0, 0, 1, 1], [], []>} : vector<8x128xbf16>, vector<128x128xbf16>, vector<8x128xf32> -> vector<8x128xf32>
    %c0_9 = arith.constant 0 : index
    %c0_10 = arith.constant 0 : index
    %12 = vector.load %arg5[%c0_9, %c0_10] : memref<1x128xf32, #tpu.memory_space<vmem>>, vector<1x128xf32>
    %13 = vector.broadcast %12 : vector<1x128xf32> to vector<8x128xf32>
    %14 = arith.addf %11, %13 : vector<8x128xf32>
    %c0_11 = arith.constant 0 : index
    %c0_12 = arith.constant 0 : index
    %15 = vector.load %arg6[%c0_11, %c0_12] : memref<8x128xf32, #tpu.memory_space<vmem>>, vector<8x128xf32>
    tpu.vector_store %arg6[%c0_11, %c0_12], %14 {strides = array<i32>} : memref<8x128xf32, #tpu.memory_space<vmem>>, vector<8x128xf32>,
    return
  }
  func.func @transform_0(%arg0: i32) -> (i32, i32) {
    %c0_i32 = arith.constant 0 : i32
    %c0_i32_0 = arith.constant 0 : i32
    return %arg0, %c0_i32 : i32, i32
  }
  func.func @transform_1(%arg0: i32) -> (i32, i32) {
    %c0_i32 = arith.constant 0 : i32
    %c0_i32_0 = arith.constant 0 : i32
    %c0_i32_1 = arith.constant 0 : i32
    return %c0_i32, %c0_i32_0 : i32, i32
  }
  func.func @transform_2(%arg0: i32) -> (i32, i32) {
    %c0_i32 = arith.constant 0 : i32
    %c0_i32_0 = arith.constant 0 : i32
    %c0_i32_1 = arith.constant 0 : i32
    return %c0_i32, %c0_i32_0 : i32, i32
  }
  func.func @transform_3(%arg0: i32) -> (i32, i32) {
    %c0_i32 = arith.constant 0 : i32
    %c0_i32_0 = arith.constant 0 : i32
    %c0_i32_1 = arith.constant 0 : i32
    return %c0_i32, %c0_i32_0 : i32, i32
  }
  func.func @transform_4(%arg0: i32) -> (i32, i32) {
    %c0_i32 = arith.constant 0 : i32
    %c0_i32_0 = arith.constant 0 : i32
    %c0_i32_1 = arith.constant 0 : i32
    return %c0_i32, %c0_i32_0 : i32, i32
  }
  func.func @transform_5(%arg0: i32) -> (i32, i32) {
    %c0_i32 = arith.constant 0 : i32
    %c0_i32_0 = arith.constant 0 : i32
    return %arg0, %c0_i32 : i32, i32
  }
}

</mosaic_0001>

<llo_original>
// kernel: two_layer_fc.1
$region0: #{two_layer_fc.1}
  #allocation0 [shape = 'u32[]', space=smem, size = 0x4, offset = 0x4, fixed_abs, tag = 'smem constant byte address 0x4 - core index']
  #allocation1 [shape = 'u32[72,128]{1,0:T(1,128)}', space=vmem, size = 0x9000, scoped, tag = 'internal scratch']
  %s0 = inlined_call_operand.vmem [shape: f32[8,1024], index: 0, kind: input, shape index: {}]
  %s1 = inlined_call_operand.vmem [shape: bf16[1024,128], index: 1, kind: input, shape index: {}]
  %s2 = inlined_call_operand.vmem [shape: f32[1,128], index: 2, kind: input, shape index: {}]
  %s3 = inlined_call_operand.vmem [shape: bf16[128,128], index: 3, kind: input, shape index: {}]
  %s4 = inlined_call_operand.vmem [shape: f32[1,128], index: 4, kind: input, shape index: {}]
  %s5 = inlined_call_operand.vmem [shape: f32[8,128], index: 5, kind: output, shape index: {}]
  %s6 = sld [smem:[#allocation0]]
  $region30: #{two_layer_fc.1} parent=0
    _
  %s8 = ssub.s32 1, %s6
  %s9 = scalar_select 0, %s8, %s6
  // Predicated region
  $region2: #{two_layer_fc.1} parent=0 // pred_check
    _
  $region3: #{two_layer_fc.1} parent=0 // pred_check_branch
    %11 = sbr.rel (0) target = $region5
  $region4: #{two_layer_fc.1} parent=0 // pred_region
    _
  $region5: #{two_layer_fc.1} parent=0 // pred_fallthru
    _
  // Predicated region
  $region6: #{two_layer_fc.1} parent=0 // pred_check
    _
  $region7: #{two_layer_fc.1} parent=0 // pred_check_branch
    %13 = sbr.rel (0) target = $region9
  $region8: #{two_layer_fc.1} parent=0 // pred_region
    _
  $region9: #{two_layer_fc.1} parent=0 // pred_fallthru
    _
  // Predicated region
  $region10: #{two_layer_fc.1} parent=0 // pred_check
    _
  $region11: #{two_layer_fc.1} parent=0 // pred_check_branch
    %15 = sbr.rel (0) target = $region13
  $region12: #{two_layer_fc.1} parent=0 // pred_region
    _
  $region13: #{two_layer_fc.1} parent=0 // pred_fallthru
    _
  // Predicated region
  $region14: #{two_layer_fc.1} parent=0 // pred_check
    _
  $region15: #{two_layer_fc.1} parent=0 // pred_check_branch
    %17 = sbr.rel (0) target = $region17
  $region16: #{two_layer_fc.1} parent=0 // pred_region
    _
  $region17: #{two_layer_fc.1} parent=0 // pred_fallthru
    _
  // Predicated region
  $region18: #{two_layer_fc.1} parent=0 // pred_check
    _
  $region19: #{two_layer_fc.1} parent=0 // pred_check_branch
    %19 = sbr.rel (0) target = $region21
  $region20: #{two_layer_fc.1} parent=0 // pred_region
    _
  $region21: #{two_layer_fc.1} parent=0 // pred_fallthru
    _
  %v20 = vld [vmem:[%s0] sm:$0xff]
  %v21 = vld [vmem:[%s0 + $0x8] sm:$0xff]
  %v22 = vld [vmem:[%s0 + $0x10] sm:$0xff]
  %v23 = vld [vmem:[%s0 + $0x18] sm:$0xff]
  %v24 = vld [vmem:[%s0 + $0x20] sm:$0xff]
  %v25 = vld [vmem:[%s0 + $0x28] sm:$0xff]
  %v26 = vld [vmem:[%s0 + $0x30] sm:$0xff]
  %v27 = vld [vmem:[%s0 + $0x38] sm:$0xff]
  %v28 = vpack.c.bf16 %v20, %v20
  %v29 = vpack.c.bf16 %v21, %v21
  %v30 = vpack.c.bf16 %v22, %v22
  %v31 = vpack.c.bf16 %v23, %v23
  %v32 = vpack.c.bf16 %v24, %v24
  %v33 = vpack.c.bf16 %v25, %v25
  %v34 = vpack.c.bf16 %v26, %v26
  %v35 = vpack.c.bf16 %v27, %v27
  %v36 = vld [vmem:[%s1] sm:$0xf]
  %v37 = vld [vmem:[%s1 + $0x4] sm:$0xf]
  %v38 = vld [vmem:[%s1 + $0x8] sm:$0xf]
  %v39 = vld [vmem:[%s1 + $0xc] sm:$0xf]
  %v40 = vld [vmem:[%s1 + $0x10] sm:$0xf]
  %v41 = vld [vmem:[%s1 + $0x14] sm:$0xf]
  %v42 = vld [vmem:[%s1 + $0x18] sm:$0xf]
  %v43 = vld [vmem:[%s1 + $0x1c] sm:$0xf]
  %v44 = vld [vmem:[%s1 + $0x20] sm:$0xf]
  %v45 = vld [vmem:[%s1 + $0x24] sm:$0xf]
  %v46 = vld [vmem:[%s1 + $0x28] sm:$0xf]
  %v47 = vld [vmem:[%s1 + $0x2c] sm:$0xf]
  %v48 = vld [vmem:[%s1 + $0x30] sm:$0xf]
  %v49 = vld [vmem:[%s1 + $0x34] sm:$0xf]
  %v50 = vld [vmem:[%s1 + $0x38] sm:$0xf]
  %v51 = vld [vmem:[%s1 + $0x3c] sm:$0xf]
  %v52 = vld [vmem:[%s1 + $0x40] sm:$0xf]
  %v53 = vld [vmem:[%s1 + $0x44] sm:$0xf]
  %v54 = vld [vmem:[%s1 + $0x48] sm:$0xf]
  %v55 = vld [vmem:[%s1 + $0x4c] sm:$0xf]
  %v56 = vld [vmem:[%s1 + $0x50] sm:$0xf]
  %v57 = vld [vmem:[%s1 + $0x54] sm:$0xf]
  %v58 = vld [vmem:[%s1 + $0x58] sm:$0xf]
  %v59 = vld [vmem:[%s1 + $0x5c] sm:$0xf]
  %v60 = vld [vmem:[%s1 + $0x60] sm:$0xf]
  %v61 = vld [vmem:[%s1 + $0x64] sm:$0xf]
  %v62 = vld [vmem:[%s1 + $0x68] sm:$0xf]
  %v63 = vld [vmem:[%s1 + $0x6c] sm:$0xf]
  %v64 = vld [vmem:[%s1 + $0x70] sm:$0xf]
  %v65 = vld [vmem:[%s1 + $0x74] sm:$0xf]
  %v66 = vld [vmem:[%s1 + $0x78] sm:$0xf]
  %v67 = vld [vmem:[%s1 + $0x7c] sm:$0xf]
  %v68 = vld [vmem:[%s1 + $0x80] sm:$0xf]
  %v69 = vld [vmem:[%s1 + $0x84] sm:$0xf]
  %v70 = vld [vmem:[%s1 + $0x88] sm:$0xf]
  %v71 = vld [vmem:[%s1 + $0x8c] sm:$0xf]
  %v72 = vld [vmem:[%s1 + $0x90] sm:$0xf]
  %v73 = vld [vmem:[%s1 + $0x94] sm:$0xf]
  %v74 = vld [vmem:[%s1 + $0x98] sm:$0xf]
  %v75 = vld [vmem:[%s1 + $0x9c] sm:$0xf]
  %v76 = vld [vmem:[%s1 + $0xa0] sm:$0xf]
  %v77 = vld [vmem:[%s1 + $0xa4] sm:$0xf]
  %v78 = vld [vmem:[%s1 + $0xa8] sm:$0xf]
  %v79 = vld [vmem:[%s1 + $0xac] sm:$0xf]
  %v80 = vld [vmem:[%s1 + $0xb0] sm:$0xf]
  %v81 = vld [vmem:[%s1 + $0xb4] sm:$0xf]
  %v82 = vld [vmem:[%s1 + $0xb8] sm:$0xf]
  %v83 = vld [vmem:[%s1 + $0xbc] sm:$0xf]
  %v84 = vld [vmem:[%s1 + $0xc0] sm:$0xf]
  %v85 = vld [vmem:[%s1 + $0xc4] sm:$0xf]
  %v86 = vld [vmem:[%s1 + $0xc8] sm:$0xf]
  %v87 = vld [vmem:[%s1 + $0xcc] sm:$0xf]
  %v88 = vld [vmem:[%s1 + $0xd0] sm:$0xf]
  %v89 = vld [vmem:[%s1 + $0xd4] sm:$0xf]
  %v90 = vld [vmem:[%s1 + $0xd8] sm:$0xf]
  %v91 = vld [vmem:[%s1 + $0xdc] sm:$0xf]
  %v92 = vld [vmem:[%s1 + $0xe0] sm:$0xf]
  %v93 = vld [vmem:[%s1 + $0xe4] sm:$0xf]
  %v94 = vld [vmem:[%s1 + $0xe8] sm:$0xf]
  %v95 = vld [vmem:[%s1 + $0xec] sm:$0xf]
  %v96 = vld [vmem:[%s1 + $0xf0] sm:$0xf]
  %v97 = vld [vmem:[%s1 + $0xf4] sm:$0xf]
  %v98 = vld [vmem:[%s1 + $0xf8] sm:$0xf]
  %v99 = vld [vmem:[%s1 + $0xfc] sm:$0xf]
  %v100 = vld [vmem:[%s1 + $0x100] sm:$0xf]
  %v101 = vld [vmem:[%s1 + $0x104] sm:$0xf]
  %v102 = vld [vmem:[%s1 + $0x108] sm:$0xf]
  %v103 = vld [vmem:[%s1 + $0x10c] sm:$0xf]
  %v104 = vld [vmem:[%s1 + $0x110] sm:$0xf]
  %v105 = vld [vmem:[%s1 + $0x114] sm:$0xf]
  %v106 = vld [vmem:[%s1 + $0x118] sm:$0xf]
  %v107 = vld [vmem:[%s1 + $0x11c] sm:$0xf]
  %v108 = vld [vmem:[%s1 + $0x120] sm:$0xf]
  %v109 = vld [vmem:[%s1 + $0x124] sm:$0xf]
  %v110 = vld [vmem:[%s1 + $0x128] sm:$0xf]
  %v111 = vld [vmem:[%s1 + $0x12c] sm:$0xf]
  %v112 = vld [vmem:[%s1 + $0x130] sm:$0xf]
  %v113 = vld [vmem:[%s1 + $0x134] sm:$0xf]
  %v114 = vld [vmem:[%s1 + $0x138] sm:$0xf]
  %v115 = vld [vmem:[%s1 + $0x13c] sm:$0xf]
  %v116 = vld [vmem:[%s1 + $0x140] sm:$0xf]
  %v117 = vld [vmem:[%s1 + $0x144] sm:$0xf]
  %v118 = vld [vmem:[%s1 + $0x148] sm:$0xf]
  %v119 = vld [vmem:[%s1 + $0x14c] sm:$0xf]
  %v120 = vld [vmem:[%s1 + $0x150] sm:$0xf]
  %v121 = vld [vmem:[%s1 + $0x154] sm:$0xf]
  %v122 = vld [vmem:[%s1 + $0x158] sm:$0xf]
  %v123 = vld [vmem:[%s1 + $0x15c] sm:$0xf]
  %v124 = vld [vmem:[%s1 + $0x160] sm:$0xf]
  %v125 = vld [vmem:[%s1 + $0x164] sm:$0xf]
  %v126 = vld [vmem:[%s1 + $0x168] sm:$0xf]
  %v127 = vld [vmem:[%s1 + $0x16c] sm:$0xf]
  %v128 = vld [vmem:[%s1 + $0x170] sm:$0xf]
  %v129 = vld [vmem:[%s1 + $0x174] sm:$0xf]
  %v130 = vld [vmem:[%s1 + $0x178] sm:$0xf]
  %v131 = vld [vmem:[%s1 + $0x17c] sm:$0xf]
  %v132 = vld [vmem:[%s1 + $0x180] sm:$0xf]
  %v133 = vld [vmem:[%s1 + $0x184] sm:$0xf]
  %v134 = vld [vmem:[%s1 + $0x188] sm:$0xf]
  %v135 = vld [vmem:[%s1 + $0x18c] sm:$0xf]
  %v136 = vld [vmem:[%s1 + $0x190] sm:$0xf]
  %v137 = vld [vmem:[%s1 + $0x194] sm:$0xf]
  %v138 = vld [vmem:[%s1 + $0x198] sm:$0xf]
  %v139 = vld [vmem:[%s1 + $0x19c] sm:$0xf]
  %v140 = vld [vmem:[%s1 + $0x1a0] sm:$0xf]
  %v141 = vld [vmem:[%s1 + $0x1a4] sm:$0xf]
  %v142 = vld [vmem:[%s1 + $0x1a8] sm:$0xf]
  %v143 = vld [vmem:[%s1 + $0x1ac] sm:$0xf]
  %v144 = vld [vmem:[%s1 + $0x1b0] sm:$0xf]
  %v145 = vld [vmem:[%s1 + $0x1b4] sm:$0xf]
  %v146 = vld [vmem:[%s1 + $0x1b8] sm:$0xf]
  %v147 = vld [vmem:[%s1 + $0x1bc] sm:$0xf]
  %v148 = vld [vmem:[%s1 + $0x1c0] sm:$0xf]
  %v149 = vld [vmem:[%s1 + $0x1c4] sm:$0xf]
  %v150 = vld [vmem:[%s1 + $0x1c8] sm:$0xf]
  %v151 = vld [vmem:[%s1 + $0x1cc] sm:$0xf]
  %v152 = vld [vmem:[%s1 + $0x1d0] sm:$0xf]
  %v153 = vld [vmem:[%s1 + $0x1d4] sm:$0xf]
  %v154 = vld [vmem:[%s1 + $0x1d8] sm:$0xf]
  %v155 = vld [vmem:[%s1 + $0x1dc] sm:$0xf]
  %v156 = vld [vmem:[%s1 + $0x1e0] sm:$0xf]
  %v157 = vld [vmem:[%s1 + $0x1e4] sm:$0xf]
  %v158 = vld [vmem:[%s1 + $0x1e8] sm:$0xf]
  %v159 = vld [vmem:[%s1 + $0x1ec] sm:$0xf]
  %v160 = vld [vmem:[%s1 + $0x1f0] sm:$0xf]
  %v161 = vld [vmem:[%s1 + $0x1f4] sm:$0xf]
  %v162 = vld [vmem:[%s1 + $0x1f8] sm:$0xf]
  %v163 = vld [vmem:[%s1 + $0x1fc] sm:$0xf]
  %v164 = vld [vmem:[%s2] sm:$0x1]
  %v166 = vperm.slane %v164, 0
  %v296 = vunpack.c.l.b16 %v36
  %v297 = vunpack.c.l.b16 %v37
  %v298 = vunpack.c.l.b16 %v38
  %v299 = vunpack.c.l.b16 %v39
  %v300 = vunpack.c.l.b16 %v40
  %v301 = vunpack.c.l.b16 %v41
  %v302 = vunpack.c.l.b16 %v42
  %v303 = vunpack.c.l.b16 %v43
  %v304 = vunpack.c.l.b16 %v44
  %v305 = vunpack.c.l.b16 %v45
  %v306 = vunpack.c.l.b16 %v46
  %v307 = vunpack.c.l.b16 %v47
  %v308 = vunpack.c.l.b16 %v48
  %v309 = vunpack.c.l.b16 %v49
  %v310 = vunpack.c.l.b16 %v50
  %v311 = vunpack.c.l.b16 %v51
  %v312 = vunpack.c.l.b16 %v52
  %v313 = vunpack.c.l.b16 %v53
  %v314 = vunpack.c.l.b16 %v54
  %v315 = vunpack.c.l.b16 %v55
  %v316 = vunpack.c.l.b16 %v56
  %v317 = vunpack.c.l.b16 %v57
  %v318 = vunpack.c.l.b16 %v58
  %v319 = vunpack.c.l.b16 %v59
  %v320 = vunpack.c.l.b16 %v60
  %v321 = vunpack.c.l.b16 %v61
  %v322 = vunpack.c.l.b16 %v62
  %v323 = vunpack.c.l.b16 %v63
  %v324 = vunpack.c.l.b16 %v64
  %v325 = vunpack.c.l.b16 %v65
  %v326 = vunpack.c.l.b16 %v66
  %v327 = vunpack.c.l.b16 %v67
  %v328 = vunpack.c.l.b16 %v68
  %v329 = vunpack.c.l.b16 %v69
  %v330 = vunpack.c.l.b16 %v70
  %v331 = vunpack.c.l.b16 %v71
  %v332 = vunpack.c.l.b16 %v72
  %v333 = vunpack.c.l.b16 %v73
  %v334 = vunpack.c.l.b16 %v74
  %v335 = vunpack.c.l.b16 %v75
  %v336 = vunpack.c.l.b16 %v76
  %v337 = vunpack.c.l.b16 %v77
  %v338 = vunpack.c.l.b16 %v78
  %v339 = vunpack.c.l.b16 %v79
  %v340 = vunpack.c.l.b16 %v80
  %v341 = vunpack.c.l.b16 %v81
  %v342 = vunpack.c.l.b16 %v82
  %v343 = vunpack.c.l.b16 %v83
  %v344 = vunpack.c.l.b16 %v84
  %v345 = vunpack.c.l.b16 %v85
  %v346 = vunpack.c.l.b16 %v86
  %v347 = vunpack.c.l.b16 %v87
  %v348 = vunpack.c.l.b16 %v88
  %v349 = vunpack.c.l.b16 %v89
  %v350 = vunpack.c.l.b16 %v90
  %v351 = vunpack.c.l.b16 %v91
  %v352 = vunpack.c.l.b16 %v92
  %v353 = vunpack.c.l.b16 %v93
  %v354 = vunpack.c.l.b16 %v94
  %v355 = vunpack.c.l.b16 %v95
  %v356 = vunpack.c.l.b16 %v96
  %v357 = vunpack.c.l.b16 %v97
  %v358 = vunpack.c.l.b16 %v98
  %v359 = vunpack.c.l.b16 %v99
  %v360 = vunpack.c.l.b16 %v100
  %v361 = vunpack.c.l.b16 %v101
  %v362 = vunpack.c.l.b16 %v102
  %v363 = vunpack.c.l.b16 %v103
  %v364 = vunpack.c.l.b16 %v104
  %v365 = vunpack.c.l.b16 %v105
  %v366 = vunpack.c.l.b16 %v106
  %v367 = vunpack.c.l.b16 %v107
  %v368 = vunpack.c.l.b16 %v108
  %v369 = vunpack.c.l.b16 %v109
  %v370 = vunpack.c.l.b16 %v110
  %v371 = vunpack.c.l.b16 %v111
  %v372 = vunpack.c.l.b16 %v112
  %v373 = vunpack.c.l.b16 %v113
  %v374 = vunpack.c.l.b16 %v114
  %v375 = vunpack.c.l.b16 %v115
  %v376 = vunpack.c.l.b16 %v116
  %v377 = vunpack.c.l.b16 %v117
  %v378 = vunpack.c.l.b16 %v118
  %v379 = vunpack.c.l.b16 %v119
  %v380 = vunpack.c.l.b16 %v120
  %v381 = vunpack.c.l.b16 %v121
  %v382 = vunpack.c.l.b16 %v122
  %v383 = vunpack.c.l.b16 %v123
  %v384 = vunpack.c.l.b16 %v124
  %v385 = vunpack.c.l.b16 %v125
  %v386 = vunpack.c.l.b16 %v126
  %v387 = vunpack.c.l.b16 %v127
  %v388 = vunpack.c.l.b16 %v128
  %v389 = vunpack.c.l.b16 %v129
  %v390 = vunpack.c.l.b16 %v130
  %v391 = vunpack.c.l.b16 %v131
  %v392 = vunpack.c.l.b16 %v132
  %v393 = vunpack.c.l.b16 %v133
  %v394 = vunpack.c.l.b16 %v134
  %v395 = vunpack.c.l.b16 %v135
  %v396 = vunpack.c.l.b16 %v136
  %v397 = vunpack.c.l.b16 %v137
  %v398 = vunpack.c.l.b16 %v138
  %v399 = vunpack.c.l.b16 %v139
  %v400 = vunpack.c.l.b16 %v140
  %v401 = vunpack.c.l.b16 %v141
  %v402 = vunpack.c.l.b16 %v142
  %v403 = vunpack.c.l.b16 %v143
  %v404 = vunpack.c.l.b16 %v144
  %v405 = vunpack.c.l.b16 %v145
  %v406 = vunpack.c.l.b16 %v146
  %v407 = vunpack.c.l.b16 %v147
  %v408 = vunpack.c.l.b16 %v148
  %v409 = vunpack.c.l.b16 %v149
  %v410 = vunpack.c.l.b16 %v150
  %v411 = vunpack.c.l.b16 %v151
  %v412 = vunpack.c.l.b16 %v152
  %v413 = vunpack.c.l.b16 %v153
  %v414 = vunpack.c.l.b16 %v154
  %v415 = vunpack.c.l.b16 %v155
  %v416 = vunpack.c.l.b16 %v156
  %v417 = vunpack.c.l.b16 %v157
  %v418 = vunpack.c.l.b16 %v158
  %v419 = vunpack.c.l.b16 %v159
  %v420 = vunpack.c.l.b16 %v160
  %v421 = vunpack.c.l.b16 %v161
  %v422 = vunpack.c.l.b16 %v162
  %v423 = vunpack.c.l.b16 %v163
  %v424 = vpack.c.b16 %v297, %v296
  %v425 = vpack.c.b16 %v299, %v298
  %v426 = vpack.c.b16 %v301, %v300
  %v427 = vpack.c.b16 %v303, %v302
  %v428 = vpack.c.b16 %v305, %v304
  %v429 = vpack.c.b16 %v307, %v306
  %v430 = vpack.c.b16 %v309, %v308
  %v431 = vpack.c.b16 %v311, %v310
  %v432 = vpack.c.b16 %v313, %v312
  %v433 = vpack.c.b16 %v315, %v314
  %v434 = vpack.c.b16 %v317, %v316
  %v435 = vpack.c.b16 %v319, %v318
  %v436 = vpack.c.b16 %v321, %v320
  %v437 = vpack.c.b16 %v323, %v322
  %v438 = vpack.c.b16 %v325, %v324
  %v439 = vpack.c.b16 %v327, %v326
  %v440 = vpack.c.b16 %v329, %v328
  %v441 = vpack.c.b16 %v331, %v330
  %v442 = vpack.c.b16 %v333, %v332
  %v443 = vpack.c.b16 %v335, %v334
  %v444 = vpack.c.b16 %v337, %v336
  %v445 = vpack.c.b16 %v339, %v338
  %v446 = vpack.c.b16 %v341, %v340
  %v447 = vpack.c.b16 %v343, %v342
  %v448 = vpack.c.b16 %v345, %v344
  %v449 = vpack.c.b16 %v347, %v346
  %v450 = vpack.c.b16 %v349, %v348
  %v451 = vpack.c.b16 %v351, %v350
  %v452 = vpack.c.b16 %v353, %v352
  %v453 = vpack.c.b16 %v355, %v354
  %v454 = vpack.c.b16 %v357, %v356
  %v455 = vpack.c.b16 %v359, %v358
  %v456 = vpack.c.b16 %v361, %v360
  %v457 = vpack.c.b16 %v363, %v362
  %v458 = vpack.c.b16 %v365, %v364
  %v459 = vpack.c.b16 %v367, %v366
  %v460 = vpack.c.b16 %v369, %v368
  %v461 = vpack.c.b16 %v371, %v370
  %v462 = vpack.c.b16 %v373, %v372
  %v463 = vpack.c.b16 %v375, %v374
  %v464 = vpack.c.b16 %v377, %v376
  %v465 = vpack.c.b16 %v379, %v378
  %v466 = vpack.c.b16 %v381, %v380
  %v467 = vpack.c.b16 %v383, %v382
  %v468 = vpack.c.b16 %v385, %v384
  %v469 = vpack.c.b16 %v387, %v386
  %v470 = vpack.c.b16 %v389, %v388
  %v471 = vpack.c.b16 %v391, %v390
  %v472 = vpack.c.b16 %v393, %v392
  %v473 = vpack.c.b16 %v395, %v394
  %v474 = vpack.c.b16 %v397, %v396
  %v475 = vpack.c.b16 %v399, %v398
  %v476 = vpack.c.b16 %v401, %v400
  %v477 = vpack.c.b16 %v403, %v402
  %v478 = vpack.c.b16 %v405, %v404
  %v479 = vpack.c.b16 %v407, %v406
  %v480 = vpack.c.b16 %v409, %v408
  %v481 = vpack.c.b16 %v411, %v410
  %v482 = vpack.c.b16 %v413, %v412
  %v483 = vpack.c.b16 %v415, %v414
  %v484 = vpack.c.b16 %v417, %v416
  %v485 = vpack.c.b16 %v419, %v418
  %v486 = vpack.c.b16 %v421, %v420
  %v487 = vpack.c.b16 %v423, %v422
  %552 = vmatpush.bf16.msra.mxu0 %v431
  %553 = vmatpush.bf16.msra.mxu0 %v430
  %554 = vmatpush.bf16.msra.mxu0 %v429
  %555 = vmatpush.bf16.msra.mxu0 %v428
  %556 = vmatpush.bf16.msra.mxu0 %v427
  %557 = vmatpush.bf16.msra.mxu0 %v426
  %558 = vmatpush.bf16.msra.mxu0 %v425
  %559 = vmatpush.bf16.msra.mxu0 %v424
  %560 = vmatmul.bf16.gmra.mxu0 %v28
  %v561 = vpop.f32.mrf.mxu0
  %v562 = vadd.f32 %v166, %v561
  %v563 = vpop.f32.mrf.mxu0
  %564 = vdwg.mxu0
  %565 = vmatpush.bf16.msra.mxu0 %v439
  %566 = vmatpush.bf16.msra.mxu0 %v438
  %567 = vmatpush.bf16.msra.mxu0 %v437
  %568 = vmatpush.bf16.msra.mxu0 %v436
  %569 = vmatpush.bf16.msra.mxu0 %v435
  %570 = vmatpush.bf16.msra.mxu0 %v434
  %571 = vmatpush.bf16.msra.mxu0 %v433
  %572 = vmatpush.bf16.msra.mxu0 %v432
  %573 = vmatmul.bf16.gmra.mxu0 %v29
  %v574 = vpop.f32.mrf.mxu0
  %v575 = vadd.f32 %v562, %v574
  %v576 = vpop.f32.mrf.mxu0
  %577 = vdwg.mxu0
  %578 = vmatpush.bf16.msra.mxu0 %v447
  %579 = vmatpush.bf16.msra.mxu0 %v446
  %580 = vmatpush.bf16.msra.mxu0 %v445
  %581 = vmatpush.bf16.msra.mxu0 %v444
  %582 = vmatpush.bf16.msra.mxu0 %v443
  %583 = vmatpush.bf16.msra.mxu0 %v442
  %584 = vmatpush.bf16.msra.mxu0 %v441
  %585 = vmatpush.bf16.msra.mxu0 %v440
  %586 = vmatmul.bf16.gmra.mxu0 %v30
  %v587 = vpop.f32.mrf.mxu0
  %v588 = vadd.f32 %v575, %v587
  %v589 = vpop.f32.mrf.mxu0
  %590 = vdwg.mxu0
  %591 = vmatpush.bf16.msra.mxu0 %v455
  %592 = vmatpush.bf16.msra.mxu0 %v454
  %593 = vmatpush.bf16.msra.mxu0 %v453
  %594 = vmatpush.bf16.msra.mxu0 %v452
  %595 = vmatpush.bf16.msra.mxu0 %v451
  %596 = vmatpush.bf16.msra.mxu0 %v450
  %597 = vmatpush.bf16.msra.mxu0 %v449
  %598 = vmatpush.bf16.msra.mxu0 %v448
  %599 = vmatmul.bf16.gmra.mxu0 %v31
  %v600 = vpop.f32.mrf.mxu0
  %v601 = vadd.f32 %v588, %v600
  %v602 = vpop.f32.mrf.mxu0
  %603 = vdwg.mxu0
  %604 = vmatpush.bf16.msra.mxu0 %v463
  %605 = vmatpush.bf16.msra.mxu0 %v462
  %606 = vmatpush.bf16.msra.mxu0 %v461
  %607 = vmatpush.bf16.msra.mxu0 %v460
  %608 = vmatpush.bf16.msra.mxu0 %v459
  %609 = vmatpush.bf16.msra.mxu0 %v458
  %610 = vmatpush.bf16.msra.mxu0 %v457
  %611 = vmatpush.bf16.msra.mxu0 %v456
  %612 = vmatmul.bf16.gmra.mxu0 %v32
  %v613 = vpop.f32.mrf.mxu0
  %v614 = vadd.f32 %v601, %v613
  %v615 = vpop.f32.mrf.mxu0
  %616 = vdwg.mxu0
  %617 = vmatpush.bf16.msra.mxu0 %v471
  %618 = vmatpush.bf16.msra.mxu0 %v470
  %619 = vmatpush.bf16.msra.mxu0 %v469
  %620 = vmatpush.bf16.msra.mxu0 %v468
  %621 = vmatpush.bf16.msra.mxu0 %v467
  %622 = vmatpush.bf16.msra.mxu0 %v466
  %623 = vmatpush.bf16.msra.mxu0 %v465
  %624 = vmatpush.bf16.msra.mxu0 %v464
  %625 = vmatmul.bf16.gmra.mxu0 %v33
  %v626 = vpop.f32.mrf.mxu0
  %v627 = vadd.f32 %v614, %v626
  %v628 = vpop.f32.mrf.mxu0
  %629 = vdwg.mxu0
  %630 = vmatpush.bf16.msra.mxu0 %v479
  %631 = vmatpush.bf16.msra.mxu0 %v478
  %632 = vmatpush.bf16.msra.mxu0 %v477
  %633 = vmatpush.bf16.msra.mxu0 %v476
  %634 = vmatpush.bf16.msra.mxu0 %v475
  %635 = vmatpush.bf16.msra.mxu0 %v474
  %636 = vmatpush.bf16.msra.mxu0 %v473
  %637 = vmatpush.bf16.msra.mxu0 %v472
  %638 = vmatmul.bf16.gmra.mxu0 %v34
  %v639 = vpop.f32.mrf.mxu0
  %v640 = vadd.f32 %v627, %v639
  %v641 = vpop.f32.mrf.mxu0
  %642 = vdwg.mxu0
  %643 = vmatpush.bf16.msra.mxu0 %v487
  %644 = vmatpush.bf16.msra.mxu0 %v486
  %645 = vmatpush.bf16.msra.mxu0 %v485
  %646 = vmatpush.bf16.msra.mxu0 %v484
  %647 = vmatpush.bf16.msra.mxu0 %v483
  %648 = vmatpush.bf16.msra.mxu0 %v482
  %649 = vmatpush.bf16.msra.mxu0 %v481
  %650 = vmatpush.bf16.msra.mxu0 %v480
  %651 = vmatmul.bf16.gmra.mxu0 %v35
  %v652 = vpop.f32.mrf.mxu0
  %v653 = vadd.f32 %v640, %v652
  %v654 = vpop.f32.mrf.mxu0
  %655 = vdwg.mxu0
  %v656 = vmax.f32 %v653, 0.0
  %v657 = vpack.c.bf16 %v656, %v656
  %v658 = vld [vmem:[%s3] sm:$0xf]
  %v659 = vld [vmem:[%s3 + $0x4] sm:$0xf]
  %v660 = vld [vmem:[%s3 + $0x8] sm:$0xf]
  %v661 = vld [vmem:[%s3 + $0xc] sm:$0xf]
  %v662 = vld [vmem:[%s3 + $0x10] sm:$0xf]
  %v663 = vld [vmem:[%s3 + $0x14] sm:$0xf]
  %v664 = vld [vmem:[%s3 + $0x18] sm:$0xf]
  %v665 = vld [vmem:[%s3 + $0x1c] sm:$0xf]
  %v666 = vld [vmem:[%s3 + $0x20] sm:$0xf]
  %v667 = vld [vmem:[%s3 + $0x24] sm:$0xf]
  %v668 = vld [vmem:[%s3 + $0x28] sm:$0xf]
  %v669 = vld [vmem:[%s3 + $0x2c] sm:$0xf]
  %v670 = vld [vmem:[%s3 + $0x30] sm:$0xf]
  %v671 = vld [vmem:[%s3 + $0x34] sm:$0xf]
  %v672 = vld [vmem:[%s3 + $0x38] sm:$0xf]
  %v673 = vld [vmem:[%s3 + $0x3c] sm:$0xf]
  %v674 = vld [vmem:[%s4] sm:$0x1]
  %v676 = vperm.slane %v674, 0
  %v694 = vunpack.c.l.b16 %v658
  %v695 = vunpack.c.l.b16 %v659
  %v696 = vunpack.c.l.b16 %v660
  %v697 = vunpack.c.l.b16 %v661
  %v698 = vunpack.c.l.b16 %v662
  %v699 = vunpack.c.l.b16 %v663
  %v700 = vunpack.c.l.b16 %v664
  %v701 = vunpack.c.l.b16 %v665
  %v702 = vunpack.c.l.b16 %v666
  %v703 = vunpack.c.l.b16 %v667
  %v704 = vunpack.c.l.b16 %v668
  %v705 = vunpack.c.l.b16 %v669
  %v706 = vunpack.c.l.b16 %v670
  %v707 = vunpack.c.l.b16 %v671
  %v708 = vunpack.c.l.b16 %v672
  %v709 = vunpack.c.l.b16 %v673
  %v710 = vpack.c.b16 %v695, %v694
  %v711 = vpack.c.b16 %v697, %v696
  %v712 = vpack.c.b16 %v699, %v698
  %v713 = vpack.c.b16 %v701, %v700
  %v714 = vpack.c.b16 %v703, %v702
  %v715 = vpack.c.b16 %v705, %v704
  %v716 = vpack.c.b16 %v707, %v706
  %v717 = vpack.c.b16 %v709, %v708
  %726 = vmatpush.bf16.msra.mxu0 %v717
  %727 = vmatpush.bf16.msra.mxu0 %v716
  %728 = vmatpush.bf16.msra.mxu0 %v715
  %729 = vmatpush.bf16.msra.mxu0 %v714
  %730 = vmatpush.bf16.msra.mxu0 %v713
  %731 = vmatpush.bf16.msra.mxu0 %v712
  %732 = vmatpush.bf16.msra.mxu0 %v711
  %733 = vmatpush.bf16.msra.mxu0 %v710
  %734 = vmatmul.bf16.gmra.mxu0 %v657
  %v735 = vpop.f32.mrf.mxu0
  %v736 = vadd.f32 %v676, %v735
  %v737 = vpop.f32.mrf.mxu0
  %738 = vdwg.mxu0
  %739 = vst [vmem:[%s5] sm:$0xff] %v736
  // Predicated region
  $region22: #{two_layer_fc.1} parent=0 // pred_check
    _
  $region23: #{two_layer_fc.1} parent=0 // pred_check_branch
    %741 = sbr.rel (0) target = $region25
  $region24: #{two_layer_fc.1} parent=0 // pred_region
    _
  $region25: #{two_layer_fc.1} parent=0 // pred_fallthru
    _
  // Predicated region
  $region26: #{two_layer_fc.1} parent=0 // pred_check
    _
  $region27: #{two_layer_fc.1} parent=0 // pred_check_branch
    %743 = sbr.rel (0) target = $region29
  $region28: #{two_layer_fc.1} parent=0 // pred_region
    _
  $region29: #{two_layer_fc.1} parent=0 // pred_fallthru
    _

</llo_original>
